<compile_context>
chip_gen: v7x
topology: tpu7x:2x2x1
jax: 0.10.0
libtpu: 0.0.40
codegen_flags: <defaults>
</compile_context>

<pallas_src>
import functools

import jax
import jax.numpy as jnp
from jax import lax
from jax.experimental import pallas as pl
from jax.experimental.pallas import tpu as pltpu

# Target size of ONE in-flight input block (BlockSpec double-buffers it).
_BUFFER_BYTES = 4 * 1024 * 1024
_VMEM_LIMIT_BYTES = 32 * 1024 * 1024


def _avg_readout_kernel(n_rows, inv_n, tn, tiles_per_split, needs_mask,
                        x_ref, o_ref, acc_ref):
    row_step = pl.program_id(2)                 # reduction axis (last grid dim)

    @pl.when(row_step == 0)
    def _():
        acc_ref[...] = jnp.zeros_like(acc_ref)

    x = x_ref[...]                              # (tn, td), input dtype
    if needs_mask:                              # compile-time flag
        tile_idx = pl.program_id(0) * tiles_per_split + row_step
        rows = tile_idx * tn + lax.broadcasted_iota(jnp.int32, x.shape, 0)
        x = jnp.where(rows < n_rows, x, jnp.zeros((), x.dtype))

    # Sublane-wise partial sums: (tn, td) -> (tn//8, 8, td), reduce the
    # leading (untiled) axis with f32 accumulation.  Hot loop = full-vreg
    # VALU adds only; the 8->1 XLU reduce is deferred to the epilogue.
    x3 = x.reshape(tn // 8, 8, x.shape[-1])
    acc_ref[...] += jnp.sum(x3, axis=0, dtype=jnp.float32)

    @pl.when(row_step == pl.num_programs(2) - 1)
    def _():
        o_ref[...] = (jnp.sum(acc_ref[...], axis=0, keepdims=True)
                      * inv_n).astype(o_ref.dtype)


def _pick_tiles(n, d, itemsize, max_tile_n, max_tile_d):
    """Return (row_tile, feature_tile); feature_tile divides d (128-multiple)."""
    # Feature (lane) tile: prefer the full width (contiguous HBM reads per
    # block row); otherwise the largest 128-multiple divisor of d that keeps
    # an >=8-row block inside the per-buffer byte budget.
    if d <= max_tile_d and d * 8 * itemsize <= _BUFFER_BYTES:
        td = d
    else:
        td = 128
        k = 256
        k_lim = min(max_tile_d, d, _BUFFER_BYTES // (8 * itemsize))
        while k <= k_lim:
            if d % k == 0:
                td = k
            k += 128

    # Row (sublane) tile: multiple of 8, sized so one input buffer is a few
    # MiB (2 buffers stay well under the 16 MiB v5e scoped default and the
    # explicit 32 MiB limit below).
    tn = min(max_tile_n, max(8, _BUFFER_BYTES // (td * itemsize)))
    tn = max(8, (tn // 8) * 8)
    n_up = 8 * ((n + 7) // 8)
    tn = min(tn, n_up)
    return tn, td


def _avg_readout_2d(seq, out_dtype, *, max_tile_n, max_tile_d):
    n, d = seq.shape
    itemsize = seq.dtype.itemsize
    tn, td = _pick_tiles(n, d, itemsize, max_tile_n, max_tile_d)

    n_feat_tiles = d // td
    tiles_total = pl.cdiv(n, tn)

    # v7x: keep >=2 tiles on the "parallel" part of the grid so both
    # TensorCores stream HBM.  Single feature tile -> split rows 2-ways and
    # combine the two f32 partial results in the wrapper (no-op on v5e/v6e).
    num_splits = 2 if (n_feat_tiles == 1 and tiles_total >= 2) else 1
    tiles_per_split = pl.cdiv(tiles_total, num_splits)

    clamped = num_splits * tiles_per_split != tiles_total
    needs_mask = (tiles_total * tn != n) or clamped

    if clamped:
        last_tile = tiles_total - 1

        def in_idx(s, j, i):
            # Logical tiles past the end are re-pointed at the last real
            # tile; their rows are fully masked out in the kernel.
            return (jnp.minimum(s * tiles_per_split + i, last_tile), j)
    else:
        def in_idx(s, j, i):
            return (s * tiles_per_split + i, j)

    kernel_dtype = jnp.float32 if num_splits > 1 else out_dtype
    kernel = functools.partial(_avg_readout_kernel, n, 1.0 / n, tn,
                               tiles_per_split, needs_mask)

    partial = pl.pallas_call(
        kernel,
        out_shape=jax.ShapeDtypeStruct((num_splits, d), kernel_dtype),
        grid_spec=pltpu.PrefetchScalarGridSpec(
            num_scalar_prefetch=0,
            grid=(num_splits, n_feat_tiles, tiles_per_split),
            in_specs=[pl.BlockSpec((tn, td), in_idx)],
            out_specs=pl.BlockSpec((1, td), lambda s, j, i: (s, j)),
            scratch_shapes=[pltpu.VMEM((8, td), jnp.float32)],
        ),
        compiler_params=pltpu.CompilerParams(
            dimension_semantics=("parallel", "parallel", "arbitrary"),
            vmem_limit_bytes=_VMEM_LIMIT_BYTES,
        ),
    )(seq)

    if num_splits == 1:
        return partial[0]
    return jnp.sum(partial, axis=0).astype(out_dtype)


def avg_readout(seq, *, max_tile_n=2048, max_tile_d=4096):
    """Pallas equivalent of AvgReadout.forward: torch.mean(seq, 0)."""
    seq = jnp.asarray(seq)
    if seq.ndim == 0:
        raise ValueError("AvgReadout needs at least a 1-D input.")

    # torch.mean rejects integer inputs; return float32 instead of silently
    # truncating back to the integer dtype.
    out_dtype = (seq.dtype if jnp.issubdtype(seq.dtype, jnp.floating)
                 else jnp.float32)

    n = seq.shape[0]
    trailing = seq.shape[1:]
    d = 1
    for s in trailing:
        d *= s

    # Tiny / lane-sparse cases: a <128-lane block wastes ~all lanes and XLA
    # is already at roofline for these reductions, so bypass the kernel.
    if seq.ndim == 1 or n == 0 or d < 128 or d % 128 != 0:
        return jnp.mean(seq, axis=0, dtype=jnp.float32).astype(out_dtype)

    seq2 = seq.reshape(n, d)
    out = _avg_readout_2d(seq2, out_dtype,
                          max_tile_n=max_tile_n, max_tile_d=max_tile_d)
    return out.reshape(trailing)


if __name__ == "__main__":
    key = jax.random.PRNGKey(0)
    k1, k2 = jax.random.split(key)

    # Case 1: ragged node count + 2 feature tiles (exercises the in-kernel
    # row mask and the multi-feature-tile "parallel" axis).
    n1, d1 = 300, 256
    x1 = jax.random.normal(k1, (n1, d1), dtype=jnp.float32)
    o1 = avg_readout(x1, max_tile_n=64, max_tile_d=128)
    jax.block_until_ready(o1)
    r1 = jnp.mean(x1, axis=0)
    assert o1.shape == (d1,) and o1.dtype == x1.dtype
    assert bool(jnp.all(jnp.isfinite(o1)))
    assert bool(jnp.allclose(o1, r1, atol=1e-5, rtol=1e-5))

    # Case 2: single feature tile -> 2-way parallel row split producing
    # (2, d) partial sums combined in the wrapper (both-TC path on v7x).
    n2, d2 = 256, 128
    x2 = jax.random.normal(k2, (n2, d2), dtype=jnp.float32)
    o2 = avg_readout(x2, max_tile_n=64, max_tile_d=256)
    jax.block_until_ready(o2)
    r2 = jnp.mean(x2, axis=0)
    assert o2.shape == (d2,) and o2.dtype == x2.dtype
    assert bool(jnp.all(jnp.isfinite(o2)))
    assert bool(jnp.allclose(o2, r2, atol=1e-5, rtol=1e-5))

    print("KERNEL_OK")
</pallas_src>

<mosaic_0001>
module attributes {stable_mosaic.version = 11 : i64} {
  func.func @_avg_readout_kernel(%arg0: i32, %arg1: i32, %arg2: i32, %arg3: memref<64x128xf32, #tpu.memory_space<vmem>>, %arg4: memref<1x128xf32, #tpu.memory_space<vmem>>, %arg5: memref<8x128xf32, #tpu.memory_space<vmem>>) attributes {dimension_semantics = [#tpu.dimension_semantics<parallel>, #tpu.dimension_semantics<parallel>, #tpu.dimension_semantics<arbitrary>], iteration_bounds = array<i64: 1, 2, 5>, scalar_prefetch = 0 : i64, scratch_operands = 1 : i64, tpu.core_type = #tpu.core_type<tc>, window_params = [{transform_indices = @transform_0, window_bounds = array<i64: 64, 128>}, {transform_indices = @transform_1, window_bounds = array<i64: 1, 128>}]} {
    %c0_i32 = arith.constant 0 : i32
    %0 = arith.cmpi eq, %arg2, %c0_i32 : i32
    %1 = arith.extui %0 : i1 to i32
    %c0_i32_0 = arith.constant 0 : i32
    %2 = arith.cmpi ne, %1, %c0_i32_0 : i32
    scf.if %2 {
      %cst_8 = arith.constant 0.000000e+00 : f32
      %22 = vector.broadcast %cst_8 : f32 to vector<8x128xf32>
      %c0_9 = arith.constant 0 : index
      %c0_10 = arith.constant 0 : index
      %23 = vector.load %arg5[%c0_9, %c0_10] : memref<8x128xf32, #tpu.memory_space<vmem>>, vector<8x128xf32>
      tpu.vector_store %arg5[%c0_9, %c0_10], %22 {strides = array<i32>} : memref<8x128xf32, #tpu.memory_space<vmem>>, vector<8x128xf32>,
    } else {
    }
    %c0 = arith.constant 0 : index
    %c0_1 = arith.constant 0 : index
    %3 = vector.load %arg3[%c0, %c0_1] : memref<64x128xf32, #tpu.memory_space<vmem>>, vector<64x128xf32>
    %c5_i32 = arith.constant 5 : i32
    %4 = arith.muli %arg0, %c5_i32 : i32
    %5 = arith.addi %4, %arg2 : i32
    %c64_i32 = arith.constant 64 : i32
    %6 = arith.muli %5, %c64_i32 : i32
    %7 = tpu.iota {dimensions = array<i32: 0>} : vector<64x128xi32>
    %8 = vector.broadcast %6 : i32 to vector<64x128xi32>
    %9 = arith.addi %8, %7 : vector<64x128xi32>
    %c300_i32 = arith.constant 300 : i32
    %10 = vector.broadcast %c300_i32 : i32 to vector<64x128xi32>
    %11 = arith.cmpi slt, %9, %10 : vector<64x128xi32>
    %cst = arith.constant 0.000000e+00 : f32
    %12 = vector.broadcast %cst : f32 to vector<64x128xf32>
    %13 = arith.select %11, %3, %12 : vector<64x128xi1>, vector<64x128xf32>
    %14 = vector.shape_cast %13 : vector<64x128xf32> to vector<8x8x128xf32>
    %c0_2 = arith.constant 0 : index
    %c0_3 = arith.constant 0 : index
    %15 = vector.load %arg5[%c0_2, %c0_3] : memref<8x128xf32, #tpu.memory_space<vmem>>, vector<8x128xf32>
    %cst_4 = arith.constant dense<0.000000e+00> : vector<8x128xf32>
    %16 = vector.multi_reduction <add>, %14, %cst_4 [0] : vector<8x8x128xf32> to vector<8x128xf32>
    %17 = arith.addf %15, %16 : vector<8x128xf32>
    %c0_5 = arith.constant 0 : index
    %c0_6 = arith.constant 0 : index
    %18 = vector.load %arg5[%c0_5, %c0_6] : memref<8x128xf32, #tpu.memory_space<vmem>>, vector<8x128xf32>
    tpu.vector_store %arg5[%c0_5, %c0_6], %17 {strides = array<i32>} : memref<8x128xf32, #tpu.memory_space<vmem>>, vector<8x128xf32>,
    %c4_i32 = arith.constant 4 : i32
    %19 = arith.cmpi eq, %arg2, %c4_i32 : i32
    %20 = arith.extui %19 : i1 to i32
    %c0_i32_7 = arith.constant 0 : i32
    %21 = arith.cmpi ne, %20, %c0_i32_7 : i32
    scf.if %21 {
      %c0_8 = arith.constant 0 : index
      %c0_9 = arith.constant 0 : index
      %22 = vector.load %arg5[%c0_8, %c0_9] : memref<8x128xf32, #tpu.memory_space<vmem>>, vector<8x128xf32>
      %cst_10 = arith.constant dense<0.000000e+00> : vector<128xf32>
      %23 = vector.multi_reduction <add>, %22, %cst_10 [0] : vector<8x128xf32> to vector<128xf32>
      %24 = vector.shape_cast %23 : vector<128xf32> to vector<1x128xf32>
      %cst_11 = arith.constant 0.00333333341 : f32
      %25 = vector.broadcast %cst_11 : f32 to vector<1x128xf32>
      %26 = arith.mulf %24, %25 : vector<1x128xf32>
      %c0_12 = arith.constant 0 : index
      %c0_13 = arith.constant 0 : index
      %27 = vector.load %arg4[%c0_12, %c0_13] : memref<1x128xf32, #tpu.memory_space<vmem>>, vector<1x128xf32>
      tpu.vector_store %arg4[%c0_12, %c0_13], %26 {strides = array<i32>} : memref<1x128xf32, #tpu.memory_space<vmem>>, vector<1x128xf32>,
    } else {
    }
    return
  }
  func.func @transform_0(%arg0: i32, %arg1: i32, %arg2: i32) -> (i32, i32) {
    %c5_i32 = arith.constant 5 : i32
    %0 = arith.muli %arg0, %c5_i32 : i32
    %1 = arith.addi %0, %arg2 : i32
    %c0_i32 = arith.constant 0 : i32
    return %1, %arg1 : i32, i32
  }
  func.func @transform_1(%arg0: i32, %arg1: i32, %arg2: i32) -> (i32, i32) {
    %c0_i32 = arith.constant 0 : i32
    return %arg0, %arg1 : i32, i32
  }
}

</mosaic_0001>

<llo_original>
// kernel: tpu_custom_call.1
$region0: #{tpu_custom_call.1}
  #allocation0 [shape = 'u32[]', space=smem, size = 0x4, offset = 0x4, fixed_abs, tag = 'smem constant byte address 0x4 - core index']
  #allocation1 [shape = 'u32[144,128]{1,0:T(1,128)}', space=vmem, size = 0x12000, scoped, tag = 'internal scratch']
  #allocation2 [shape = 'f32[8,128]{1,0:T(8,128)}', space=vmem, size = 0x1000, scoped, tag = 'scratch operand']
  %s0 = inlined_call_operand.hbm [shape: f32[300,256], index: 0, kind: input, shape index: {}]
  %s1 = inlined_call_operand.hbm [shape: f32[1,256], index: 1, kind: output, shape index: {}]
  %s2 = sld [smem:[#allocation0]]
  $region49: #{tpu_custom_call.1} parent=0
    _
  %s4 = ssub.s32 1, %s2
  %s5 = scalar_select 0, %s4, %s2
  $region1: #{tpu_custom_call.1} parent=0
    #allocation3 [shape = 'u8[65536]{0}', space=vmem, size = 0x10000, scoped, tag = 'input window, operand 0']
    #allocation4 [shape = 's32[2]{0}', space=sflag, size = 0x8, scoped, tag = 'scoped memory for tpu_custom_call.1']
    #allocation5 [shape = 's32[2]{0}', space=sflag, size = 0x8, scoped, tag = 'scoped memory for tpu_custom_call.1']
    #allocation6 [shape = 'u8[1024]{0}', space=vmem, size = 0x400, scoped, tag = 'output window, operand 0']
    %6 = vsyncpa [#allocation4], 0
    %s7 = scalar_lea.sflag [#allocation4], 1
    %8 = vsyncpa %s7, 0
    %9 = vsyncpa [#allocation5], 0
    %s10 = scalar_lea.sflag [#allocation5], 1
    %11 = vsyncpa %s10, 0
    loop: start=0, step=1, limit=12
    $region2: #{tpu_custom_call.1} parent=1 // loop_pre_header
      _
    $region3: #{tpu_custom_call.1} parent=1 // loop_header
      %s13 = sphi 0, %s17
      %p14 = scmp.ge.s32.totalorder %s13, 12
      %s20 = sphi 0, %s39
      %s21 = sphi 0, %s35
      %s22 = sphi 0, %s31
      %s23 = sphi 0, %s20
      %s24 = sphi 0, %s21
      %s25 = sphi 0, %s22
      %s26 = sphi 0, %s23
      %s27 = sphi 0, %s24
      %s28 = sphi 0, %s25
      %s48 = sphi 0, %s50
      %s51 = sphi 0, %s48
      %s52 = sphi 0, %s51
      %s68 = sphi 0, %s52
      %s76 = sphi 0, %s78
      %s79 = sphi 0, %s76
      %s80 = sphi 0, %s79
      %s96 = sphi 0, %s80
    $region4: #{tpu_custom_call.1} parent=1 // loop_header_branch
      %16 = sbr.rel (%p14) target = $region8
    $region5: #{tpu_custom_call.1} parent=1 // loop_body
      %s18 = ssub.s32 %s13, 1
      %s19 = ssub.s32 %s13, 2
      %s29 = sadd.s32 1, %s22
      %p30 = scmp.ge.s32.totalorder %s29, 5
      %s31 = scalar_select %p30, 0, %s29
      %s32 = sadd.s32 1, %s21
      %s33 = scalar_select %p30, %s32, %s21
      %p34 = scmp.ge.s32.totalorder %s33, 2
      %s35 = scalar_select %p34, 0, %s33
      %s36 = sadd.s32 1, %s20
      %s37 = scalar_select %p34, %s36, %s20
      %p38 = scmp.ge.s32.totalorder %s37, 1
      %s39 = scalar_select %p38, 0, %s37
      %s40 = smul.u32 %s20, 5
      %s41 = sadd.s32 %s40, %s22
      %s42 = smul.u32 %s39, 5
      %s43 = sadd.s32 %s42, %s31
      %s44 = ssub.s32 %s41, %s43
      %s45 = ssub.s32 %s21, %s35
      %s46 = sor.u32 %s44, %s45
      %p47 = scmp.eq.s32.totalorder %s46, 0
      %s49 = sadd.s32 %s48, 1
      %s50 = scalar_select %p47, %s48, %s49
      %p53 = pneg %p47
      %p54 = scmp.eq.s32.totalorder %s13, 9
      %p55 = por %p53, %p54
      %p56 = scmp.ne.s32.totalorder %s48, %s51
      %p57 = scmp.eq.s32.totalorder %s13, 0
      %p58 = por %p56, %p57
      %p59 = scmp.ne.s32.totalorder %s48, %s51
      %p60 = scmp.eq.s32.totalorder %s18, 9
      %p61 = por %p59, %p60
      %p62 = scmp.ne.s32.totalorder %s51, %s52
      %p63 = scmp.eq.s32.totalorder %s18, 0
      %p64 = por %p62, %p63
      %p65 = scmp.ne.s32.totalorder %s51, %s52
      %p66 = scmp.eq.s32.totalorder %s19, 9
      %p67 = por %p65, %p66
      %p69 = scmp.ne.s32.totalorder %s52, %s68
      %p70 = scmp.eq.s32.totalorder %s19, 0
      %p71 = por %p69, %p70
      %s72 = ssub.s32 %s20, %s39
      %s73 = ssub.s32 %s21, %s35
      %s74 = sor.u32 %s72, %s73
      %p75 = scmp.eq.s32.totalorder %s74, 0
      %s77 = sadd.s32 %s76, 1
      %s78 = scalar_select %p75, %s76, %s77
      %p81 = pneg %p75
      %p82 = scmp.eq.s32.totalorder %s13, 9
      %p83 = por %p81, %p82
      %p84 = scmp.ne.s32.totalorder %s76, %s79
      %p85 = scmp.eq.s32.totalorder %s13, 0
      %p86 = por %p84, %p85
      %p87 = scmp.ne.s32.totalorder %s76, %s79
      %p88 = scmp.eq.s32.totalorder %s18, 9
      %p89 = por %p87, %p88
      %p90 = scmp.ne.s32.totalorder %s79, %s80
      %p91 = scmp.eq.s32.totalorder %s18, 0
      %p92 = por %p90, %p91
      %p93 = scmp.ne.s32.totalorder %s79, %s80
      %p94 = scmp.eq.s32.totalorder %s19, 9
      %p95 = por %p93, %p94
      %p97 = scmp.ne.s32.totalorder %s80, %s96
      %p98 = scmp.eq.s32.totalorder %s19, 0
      %p99 = por %p97, %p98
      %p100 = scmp.le.s32.totalorder 1, %s13
      %p101 = scmp.lt.s32.totalorder %s13, 11
      %p102 = pnand %p100, %p101
      %p103 = pneg %p102
      // Predicated region
      $region9: #{tpu_custom_call.1} parent=5 // pred_check
        _
      $region10: #{tpu_custom_call.1} parent=5 // pred_check_branch
        %105 = sbr.rel (%p102) target = $region12
      $region11: #{tpu_custom_call.1} parent=5 // pred_region
        %s106 = ssub.s32 %s13, 1
      $region12: #{tpu_custom_call.1} parent=5 // pred_fallthru
        _
      %p107 = scmp.lt.s32.totalorder %s13, 10
      // Predicated region
      $region13: #{tpu_custom_call.1} parent=5 // pred_check
        %p108 = pneg %p107
      $region14: #{tpu_custom_call.1} parent=5 // pred_check_branch
        %110 = sbr.rel (%p108) target = $region16
      $region15: #{tpu_custom_call.1} parent=5 // pred_region
        // Predicated region
        $region17: #{tpu_custom_call.1} parent=15 // pred_check
          %p111 = pneg %p58
        $region18: #{tpu_custom_call.1} parent=15 // pred_check_branch
          %113 = sbr.rel (%p111) target = $region20
        $region19: #{tpu_custom_call.1} parent=15 // pred_region
          %s114 = sand.u32 %s48, 1
          %s115 = scalar_lea.sflag [#allocation4], %s114
          %s116 = sand.u32 %s48, 1
          %s117 = smul.addr %s116, 64
          %s118 = scalar_lea.vmem [#allocation3], %s117
          %s119 = smul.u32 %s20, 5
          %s120 = sadd.s32 %s119, %s22
          %s121 = smul.u32 8, %s120
          %s122 = ssub.s32 38, %s121
          %p123 = scmp.lt.s32.totalorder %s122, 8
          %s124 = scalar_select %p123, %s122, 8
          %s125 = smul.u32 128, %s124
          %s127 = ssub.s32 1024, %s125
          %128 = vsyncadd %s115, %s127
          %p129 = scmp.ne.s32.totalorder 0, %s125
          %s130 = smul.addr %s121, 2
          %s131 = sadd.s32 %s21, %s130
          %s132 = smul.addr %s131, 128
          %s133 = scalar_lea.hbm %s0, %s132
          %s134 = smul.u32 8, %s124
          %s135 = sshll.u32 %s118, 4
          %s136 = int_to_ptr.vmem [resolvable:$true] %s135
          %s137 = sshll.u32 %s134, 4
          %141 = dma.hbm_to_vmem [thread:$0]  (%p129), %s133, %s137, %s136, %s115, 256, 128, 8
        $region20: #{tpu_custom_call.1} parent=15 // pred_fallthru
          _
      $region16: #{tpu_custom_call.1} parent=5 // pred_fallthru
        _
      %p142 = scmp.le.s32.totalorder 1, %s13
      %p143 = scmp.lt.s32.totalorder %s13, 11
      %p144 = pnand %p142, %p143
      %p145 = pneg %p144
      // Predicated region
      $region21: #{tpu_custom_call.1} parent=5 // pred_check
        _
      $region22: #{tpu_custom_call.1} parent=5 // pred_check_branch
        %147 = sbr.rel (%p144) target = $region24
      $region23: #{tpu_custom_call.1} parent=5 // pred_region
        %s148 = ssub.s32 %s13, 1
        %s149 = sand.u32 %s51, 1
        %s150 = scalar_lea.sflag [#allocation4], %s149
        %s151 = sand.u32 %s51, 1
        %s152 = smul.addr %s151, 64
        %s153 = scalar_lea.vmem [#allocation3], %s152
        // Predicated region
        $region25: #{tpu_custom_call.1} parent=23 // pred_check
          %p154 = pneg %p64
        $region26: #{tpu_custom_call.1} parent=23 // pred_check_branch
          %156 = sbr.rel (%p154) target = $region28
        $region27: #{tpu_custom_call.1} parent=23 // pred_region
          %157 = dma.done %s150, 1024
        $region28: #{tpu_custom_call.1} parent=23 // pred_fallthru
          _
        %s158 = sand.u32 %s51, 1
        %s159 = scalar_lea.sflag [#allocation4], %s158
        %s160 = sand.u32 %s51, 1
        %s161 = smul.addr %s160, 64
        %s162 = scalar_lea.vmem [#allocation3], %s161
        %p163 = pneg %p64
        %p164 = pneg %p61
        %p165 = pneg %p92
        %p166 = pneg %p89
        %s167 = sand.u32 %s79, 1
        %s168 = scalar_lea.sflag [#allocation5], %s167
        %s169 = sand.u32 %s79, 1
        %s170 = scalar_lea.vmem [#allocation6], %s169
        %s171 = smul.u32 %s23, 5
        %s172 = sadd.s32 %s171, %s25
        %s173 = smul.u32 8, %s172
        %s174 = ssub.s32 38, %s173
        %p175 = scmp.lt.s32.totalorder %s174, 8
        %s176 = scalar_select %p175, %s174, 8
        %s177 = smul.u32 128, %s176
        %p178 = scmp.eq.s32.totalorder %s25, 0
        // Predicated region
        $region29: #{tpu_custom_call.1} parent=23 // pred_check
          %p179 = pneg %p178
        $region30: #{tpu_custom_call.1} parent=23 // pred_check_branch
          %181 = sbr.rel (%p179) target = $region32
        $region31: #{tpu_custom_call.1} parent=23 // pred_region
          %182 = vst [vmem:[#allocation2] sm:$0xff] 0.0
        $region32: #{tpu_custom_call.1} parent=23 // pred_fallthru
          _
        %v183 = vld [vmem:[%s153] sm:$0xff]
        %v184 = vld [vmem:[%s153 + $0x8] sm:$0xff]
        %v185 = vld [vmem:[%s153 + $0x10] sm:$0xff]
        %v186 = vld [vmem:[%s153 + $0x18] sm:$0xff]
        %v187 = vld [vmem:[%s153 + $0x20] sm:$0xff]
        %v188 = vld [vmem:[%s153 + $0x28] sm:$0xff]
        %v189 = vld [vmem:[%s153 + $0x30] sm:$0xff]
        %v190 = vld [vmem:[%s153 + $0x38] sm:$0xff]
        %s191 = smul.u32 %s23, 5
        %s192 = sadd.s32 %s191, %s25
        %s193 = smul.u32 %s192, 64
        %v194 = vlaneseq
        %v195 = vshrl.u32 %v194, 7
        %v196 = vadd.s32 %v195, 8
        %v197 = vadd.s32 %v195, 16
        %v198 = vadd.s32 %v195, 24
        %v199 = vadd.s32 %v195, 32
        %v200 = vadd.s32 %v195, 40
        %v201 = vadd.s32 %v195, 48
        %v202 = vadd.s32 %v195, 56
        %v203 = vstv %s193
        %v204 = vadd.s32 %v203, %v195
        %v205 = vadd.s32 %v203, %v196
        %v206 = vadd.s32 %v203, %v197
        %v207 = vadd.s32 %v203, %v198
        %v208 = vadd.s32 %v203, %v199
        %v209 = vadd.s32 %v203, %v200
        %v210 = vadd.s32 %v203, %v201
        %v211 = vadd.s32 %v203, %v202
        %vm212 = vcmp.lt.s32.totalorder %v204, 300
        %vm213 = vcmp.lt.s32.totalorder %v205, 300
        %vm214 = vcmp.lt.s32.totalorder %v206, 300
        %vm215 = vcmp.lt.s32.totalorder %v207, 300
        %vm216 = vcmp.lt.s32.totalorder %v208, 300
        %vm217 = vcmp.lt.s32.totalorder %v209, 300
        %vm218 = vcmp.lt.s32.totalorder %v210, 300
        %vm219 = vcmp.lt.s32.totalorder %v211, 300
        %v220 = vsel %vm212, %v183, 0.0
        %v221 = vsel %vm213, %v184, 0.0
        %v222 = vsel %vm214, %v185, 0.0
        %v223 = vsel %vm215, %v186, 0.0
        %v224 = vsel %vm216, %v187, 0.0
        %v225 = vsel %vm217, %v188, 0.0
        %v226 = vsel %vm218, %v189, 0.0
        %v227 = vsel %vm219, %v190, 0.0
        %v228 = vld [vmem:[#allocation2] sm:$0xff]
        %v229 = vadd.f32 %v220, %v221
        %v230 = vadd.f32 %v229, %v222
        %v231 = vadd.f32 %v230, %v223
        %v232 = vadd.f32 %v231, %v224
        %v233 = vadd.f32 %v232, %v225
        %v234 = vadd.f32 %v233, %v226
        %v235 = vadd.f32 %v234, %v227
        %v236 = vadd.f32 %v228, %v235
        %237 = vst [vmem:[#allocation2] sm:$0xff] %v236
        %p238 = scmp.eq.s32.totalorder %s25, 4
        // Predicated region
        $region33: #{tpu_custom_call.1} parent=23 // pred_check
          %p239 = pneg %p238
        $region34: #{tpu_custom_call.1} parent=23 // pred_check_branch
          %241 = sbr.rel (%p239) target = $region36
        $region35: #{tpu_custom_call.1} parent=23 // pred_region
          %v242 = vld [vmem:[#allocation2] sm:$0xff]
          %v243 = vrot.slane %v242, 4
          %v244 = vadd.f32 %v242, %v243
          %v245 = vrot.slane %v244, 2
          %v246 = vadd.f32 %v244, %v245
          %v247 = vrot.slane %v246, 1
          %v248 = vadd.f32 %v246, %v247
          %v249 = vmul.f32 %v248, 0.0033333334
          %250 = vst [vmem:[%s170] sm:$0x1] %v249
        $region36: #{tpu_custom_call.1} parent=23 // pred_fallthru
          _
        %s251 = sand.u32 %s79, 1
        %s252 = scalar_lea.sflag [#allocation5], %s251
        %s253 = sand.u32 %s79, 1
        %s254 = scalar_lea.vmem [#allocation6], %s253
        // Predicated region
        $region37: #{tpu_custom_call.1} parent=23 // pred_check
          %p255 = pneg %p89
        $region38: #{tpu_custom_call.1} parent=23 // pred_check_branch
          %257 = sbr.rel (%p255) target = $region40
        $region39: #{tpu_custom_call.1} parent=23 // pred_region
          %s259 = ssub.s32 16, 16
          %260 = vsyncadd %s252, %s259
          %s261 = smul.addr %s23, 2
          %s262 = sadd.s32 %s24, %s261
          %s263 = smul.addr %s262, 16
          %s264 = scalar_lea.hbm %s1, %s263
          %s266 = sshll.u32 %s254, 4
          %s267 = int_to_ptr.vmem [resolvable:$true] %s266
          %269 = dma.vmem_to_hbm [thread:$0]  %s267, 16, %s264, %s252
        $region40: #{tpu_custom_call.1} parent=23 // pred_fallthru
          _
      $region24: #{tpu_custom_call.1} parent=5 // pred_fallthru
        _
      %p270 = scmp.le.s32.totalorder 2, %s13
      // Predicated region
      $region41: #{tpu_custom_call.1} parent=5 // pred_check
        %p271 = pneg %p270
      $region42: #{tpu_custom_call.1} parent=5 // pred_check_branch
        %273 = sbr.rel (%p271) target = $region44
      $region43: #{tpu_custom_call.1} parent=5 // pred_region
        %s274 = ssub.s32 %s13, 2
        // Predicated region
        $region45: #{tpu_custom_call.1} parent=43 // pred_check
          %p275 = pneg %p95
        $region46: #{tpu_custom_call.1} parent=43 // pred_check_branch
          %277 = sbr.rel (%p275) target = $region48
        $region47: #{tpu_custom_call.1} parent=43 // pred_region
          %s278 = sand.u32 %s80, 1
          %s279 = scalar_lea.sflag [#allocation5], %s278
          %s280 = sand.u32 %s80, 1
          %s281 = scalar_lea.vmem [#allocation6], %s280
          %282 = dma.done %s279, 16
        $region48: #{tpu_custom_call.1} parent=43 // pred_fallthru
          _
      $region44: #{tpu_custom_call.1} parent=5 // pred_fallthru
        _
    $region6: #{tpu_custom_call.1} parent=1 // loop_footer
      %s17 = sadd.s32 1, %s13
    $region7: #{tpu_custom_call.1} parent=1 // loop_footer_branch
      %12 = sbr.rel target = $region3
    $region8: #{tpu_custom_call.1} parent=1 // loop_exit
      _
    %283 = vsyncpa [#allocation4], 1
    %s284 = scalar_lea.sflag [#allocation4], 1
    %285 = vsyncpa %s284, 1
    %286 = vsyncpa [#allocation5], 1
    %s287 = scalar_lea.sflag [#allocation5], 1
    %288 = vsyncpa %s287, 1

</llo_original>
